<compile_context>
chip_gen: v7x
topology: tpu7x:2x2x1
jax: 0.10.0
libtpu: 0.0.40
codegen_flags: <defaults>
</compile_context>

<pallas_src>
import functools

import jax
import jax.numpy as jnp
from jax.experimental import pallas as pl
from jax.experimental.pallas import tpu as pltpu


def _round_up(x, m):
    return ((x + m - 1) // m) * m


def _pcbm_kernel(emb_ref, cavs_t_ref, icpt_ref, w_t_ref, b_ref,
                 out_ref, dist_ref):
    # dist tile: (TB, Cpad) = (TB, D) @ (D, Cpad) + intercept row, on the MXU.
    dist = jnp.dot(emb_ref[...], cavs_t_ref[...],
                   preferred_element_type=jnp.float32) + icpt_ref[...]
    dist_ref[...] = dist.astype(dist_ref.dtype)
    # logits tile: (TB, Npad) = (TB, Cpad) @ (Cpad, Npad) + bias row.
    logits = jnp.dot(dist.astype(w_t_ref.dtype), w_t_ref[...],
                     preferred_element_type=jnp.float32) + b_ref[...]
    out_ref[...] = logits.astype(out_ref.dtype)


@functools.partial(jax.jit, static_argnames=("tile_b", "use_bf16"))
def pcbm_forward(emb, cavs, intercepts, norms, w_cls, b_cls,
                 *, tile_b=512, use_bf16=False):
    """Returns (out, dist) matching PosthocLinearCBM.forward(emb, return_dist=True)."""
    B, D = emb.shape
    n_concepts = cavs.shape[0]
    n_classes = w_cls.shape[0]

    # ---- one-time weight preparation (wrapper-side, cacheable) -------------
    # Fold 1/norms into the concept bank; pre-transpose both weight matrices
    # so the kernel never does an in-kernel .T (no XLU relayout per step).
    cavs_scaled_t = (cavs / norms[:, None]).T            # (D, n_concepts)
    icpt_scaled = (intercepts / norms).reshape(1, n_concepts)
    w_t = w_cls.T                                        # (n_concepts, n_classes)
    b_row = b_cls.reshape(1, n_classes)

    # Lane-dense padding: concepts / classes up to multiples of 128,
    # batch up to a multiple of the batch tile (itself a multiple of 8).
    c_pad = _round_up(n_concepts, 128)
    n_pad = _round_up(n_classes, 128)
    tb = min(tile_b, _round_up(B, 8))
    b_pad = _round_up(B, tb)

    mm_dtype = jnp.bfloat16 if use_bf16 else emb.dtype

    emb_p = jnp.zeros((b_pad, D), mm_dtype).at[:B, :].set(emb.astype(mm_dtype))
    cavs_p = jnp.zeros((D, c_pad), mm_dtype).at[:, :n_concepts].set(
        cavs_scaled_t.astype(mm_dtype))
    icpt_p = jnp.zeros((1, c_pad), jnp.float32).at[:, :n_concepts].set(icpt_scaled)
    w_p = jnp.zeros((c_pad, n_pad), mm_dtype).at[:n_concepts, :n_classes].set(
        w_t.astype(mm_dtype))
    b_p = jnp.zeros((1, n_pad), jnp.float32).at[:, :n_classes].set(b_row)

    grid = (b_pad // tb,)
    resident = lambda shape: pl.BlockSpec(shape, lambda i: (0, 0))
    batched = lambda shape: pl.BlockSpec(shape, lambda i: (i, 0))

    flops = 2 * b_pad * D * c_pad + 2 * b_pad * c_pad * n_pad
    bytes_accessed = (emb_p.size * emb_p.dtype.itemsize
                      + cavs_p.size * cavs_p.dtype.itemsize
                      + w_p.size * w_p.dtype.itemsize
                      + b_pad * (c_pad + n_pad) * 4)

    out_p, dist_p = pl.pallas_call(
        _pcbm_kernel,
        out_shape=(
            jax.ShapeDtypeStruct((b_pad, n_pad), jnp.float32),
            jax.ShapeDtypeStruct((b_pad, c_pad), jnp.float32),
        ),
        grid=grid,
        in_specs=[
            batched((tb, D)),            # emb tile, double-buffered per step
            resident((D, c_pad)),        # scaled, pre-transposed concept bank
            resident((1, c_pad)),        # scaled intercepts
            resident((c_pad, n_pad)),    # classifier weight (pre-transposed)
            resident((1, n_pad)),        # classifier bias
        ],
        out_specs=(
            batched((tb, n_pad)),
            batched((tb, c_pad)),
        ),
        compiler_params=pltpu.CompilerParams(
            dimension_semantics=("parallel",),
        ),
        cost_estimate=pl.CostEstimate(
            flops=flops, transcendentals=0, bytes_accessed=bytes_accessed),
    )(emb_p, cavs_p, icpt_p, w_p, b_p)

    # Strip padding.
    return out_p[:B, :n_classes], dist_p[:B, :n_concepts]


def pcbm_forward_ref(emb, cavs, intercepts, norms, w_cls, b_cls):
    margins = (cavs @ emb.T + intercepts.reshape(-1, 1)) / norms.reshape(-1, 1)
    dist = margins.T
    out = dist @ w_cls.T + b_cls
    return out, dist


if __name__ == "__main__":
    # Small, deterministic synthetic setup (no checkpoint loading).
    B, D = 8, 32           # batch of embeddings, embedding dim
    n_concepts = 16        # concept bank size
    n_classes = 5

    key = jax.random.PRNGKey(0)
    k_emb, k_cav, k_icpt, k_norm, k_w, k_b = jax.random.split(key, 6)

    emb = jax.random.normal(k_emb, (B, D), dtype=jnp.float32)
    cavs = jax.random.normal(k_cav, (n_concepts, D), dtype=jnp.float32)
    intercepts = jax.random.normal(k_icpt, (n_concepts,), dtype=jnp.float32)
    # norms are positive (they are vector norms in the concept bank)
    norms = jax.random.uniform(k_norm, (n_concepts,), dtype=jnp.float32,
                               minval=0.5, maxval=2.0)
    # nn.Linear(n_concepts, n_classes): weight (n_classes, n_concepts), bias (n_classes,)
    w_cls = jax.random.normal(k_w, (n_classes, n_concepts), dtype=jnp.float32) * 0.1
    b_cls = jax.random.normal(k_b, (n_classes,), dtype=jnp.float32) * 0.1

    out, dist = pcbm_forward(emb, cavs, intercepts, norms, w_cls, b_cls)
    out = jax.block_until_ready(out)
    dist = jax.block_until_ready(dist)

    out_ref, dist_ref = pcbm_forward_ref(emb, cavs, intercepts, norms, w_cls, b_cls)
    assert out.shape == (B, n_classes) and dist.shape == (B, n_concepts)
    assert jnp.allclose(dist, dist_ref, atol=1e-4, rtol=1e-4), "dist mismatch"
    assert jnp.allclose(out, out_ref, atol=1e-4, rtol=1e-4), "logits mismatch"

    print("KERNEL_OK")
</pallas_src>

<mosaic_0001>
module attributes {stable_mosaic.version = 11 : i64} {
  func.func @_pcbm_kernel(%arg0: i32, %arg1: memref<8x32xf32, #tpu.memory_space<vmem>>, %arg2: memref<32x128xf32, #tpu.memory_space<vmem>>, %arg3: memref<1x128xf32, #tpu.memory_space<vmem>>, %arg4: memref<128x128xf32, #tpu.memory_space<vmem>>, %arg5: memref<1x128xf32, #tpu.memory_space<vmem>>, %arg6: memref<8x128xf32, #tpu.memory_space<vmem>>, %arg7: memref<8x128xf32, #tpu.memory_space<vmem>>) attributes {dimension_semantics = [#tpu.dimension_semantics<parallel>], iteration_bounds = array<i64: 1>, scalar_prefetch = 0 : i64, scratch_operands = 0 : i64, tpu.core_type = #tpu.core_type<tc>, window_params = [{transform_indices = @transform_0, window_bounds = array<i64: 8, 32>}, {pipeline_mode = #tpu.pipeline_mode<synchronous>, transform_indices = @transform_1, window_bounds = array<i64: 32, 128>}, {pipeline_mode = #tpu.pipeline_mode<synchronous>, transform_indices = @transform_2, window_bounds = array<i64: 1, 128>}, {pipeline_mode = #tpu.pipeline_mode<synchronous>, transform_indices = @transform_3, window_bounds = array<i64: 128, 128>}, {pipeline_mode = #tpu.pipeline_mode<synchronous>, transform_indices = @transform_4, window_bounds = array<i64: 1, 128>}, {transform_indices = @transform_5, window_bounds = array<i64: 8, 128>}, {transform_indices = @transform_6, window_bounds = array<i64: 8, 128>}]} {
    %c0 = arith.constant 0 : index
    %c0_0 = arith.constant 0 : index
    %0 = vector.load %arg1[%c0, %c0_0] : memref<8x32xf32, #tpu.memory_space<vmem>>, vector<8x32xf32>
    %c0_1 = arith.constant 0 : index
    %c0_2 = arith.constant 0 : index
    %1 = vector.load %arg2[%c0_1, %c0_2] : memref<32x128xf32, #tpu.memory_space<vmem>>, vector<32x128xf32>
    %cst = arith.constant dense<0.000000e+00> : vector<8x128xf32>
    %2 = tpu.matmul %0, %1, %cst {dimension_numbers = #tpu.dot_dimension_numbers<[1], [0], [0], [1], [0, 0, 1, 1], [], []>} : vector<8x32xf32>, vector<32x128xf32>, vector<8x128xf32> -> vector<8x128xf32>
    %c0_3 = arith.constant 0 : index
    %c0_4 = arith.constant 0 : index
    %3 = vector.load %arg3[%c0_3, %c0_4] : memref<1x128xf32, #tpu.memory_space<vmem>>, vector<1x128xf32>
    %4 = vector.broadcast %3 : vector<1x128xf32> to vector<8x128xf32>
    %5 = arith.addf %2, %4 : vector<8x128xf32>
    %c0_5 = arith.constant 0 : index
    %c0_6 = arith.constant 0 : index
    %6 = vector.load %arg7[%c0_5, %c0_6] : memref<8x128xf32, #tpu.memory_space<vmem>>, vector<8x128xf32>
    tpu.vector_store %arg7[%c0_5, %c0_6], %5 {strides = array<i32>} : memref<8x128xf32, #tpu.memory_space<vmem>>, vector<8x128xf32>,
    %c0_7 = arith.constant 0 : index
    %c0_8 = arith.constant 0 : index
    %7 = vector.load %arg4[%c0_7, %c0_8] : memref<128x128xf32, #tpu.memory_space<vmem>>, vector<128x128xf32>
    %cst_9 = arith.constant dense<0.000000e+00> : vector<8x128xf32>
    %8 = tpu.matmul %5, %7, %cst_9 {dimension_numbers = #tpu.dot_dimension_numbers<[1], [0], [0], [1], [0, 0, 1, 1], [], []>} : vector<8x128xf32>, vector<128x128xf32>, vector<8x128xf32> -> vector<8x128xf32>
    %c0_10 = arith.constant 0 : index
    %c0_11 = arith.constant 0 : index
    %9 = vector.load %arg5[%c0_10, %c0_11] : memref<1x128xf32, #tpu.memory_space<vmem>>, vector<1x128xf32>
    %10 = vector.broadcast %9 : vector<1x128xf32> to vector<8x128xf32>
    %11 = arith.addf %8, %10 : vector<8x128xf32>
    %c0_12 = arith.constant 0 : index
    %c0_13 = arith.constant 0 : index
    %12 = vector.load %arg6[%c0_12, %c0_13] : memref<8x128xf32, #tpu.memory_space<vmem>>, vector<8x128xf32>
    tpu.vector_store %arg6[%c0_12, %c0_13], %11 {strides = array<i32>} : memref<8x128xf32, #tpu.memory_space<vmem>>, vector<8x128xf32>,
    return
  }
  func.func @transform_0(%arg0: i32) -> (i32, i32) {
    %c0_i32 = arith.constant 0 : i32
    %c0_i32_0 = arith.constant 0 : i32
    return %arg0, %c0_i32 : i32, i32
  }
  func.func @transform_1(%arg0: i32) -> (i32, i32) {
    %c0_i32 = arith.constant 0 : i32
    %c0_i32_0 = arith.constant 0 : i32
    %c0_i32_1 = arith.constant 0 : i32
    return %c0_i32, %c0_i32_0 : i32, i32
  }
  func.func @transform_2(%arg0: i32) -> (i32, i32) {
    %c0_i32 = arith.constant 0 : i32
    %c0_i32_0 = arith.constant 0 : i32
    %c0_i32_1 = arith.constant 0 : i32
    return %c0_i32, %c0_i32_0 : i32, i32
  }
  func.func @transform_3(%arg0: i32) -> (i32, i32) {
    %c0_i32 = arith.constant 0 : i32
    %c0_i32_0 = arith.constant 0 : i32
    %c0_i32_1 = arith.constant 0 : i32
    return %c0_i32, %c0_i32_0 : i32, i32
  }
  func.func @transform_4(%arg0: i32) -> (i32, i32) {
    %c0_i32 = arith.constant 0 : i32
    %c0_i32_0 = arith.constant 0 : i32
    %c0_i32_1 = arith.constant 0 : i32
    return %c0_i32, %c0_i32_0 : i32, i32
  }
  func.func @transform_5(%arg0: i32) -> (i32, i32) {
    %c0_i32 = arith.constant 0 : i32
    %c0_i32_0 = arith.constant 0 : i32
    return %arg0, %c0_i32 : i32, i32
  }
  func.func @transform_6(%arg0: i32) -> (i32, i32) {
    %c0_i32 = arith.constant 0 : i32
    %c0_i32_0 = arith.constant 0 : i32
    return %arg0, %c0_i32 : i32, i32
  }
}

</mosaic_0001>

<llo_original>
// kernel: pcbm_forward.1
$region0: #{pcbm_forward.1}
  #allocation0 [shape = 'u32[]', space=smem, size = 0x4, offset = 0x4, fixed_abs, tag = 'smem constant byte address 0x4 - core index']
  #allocation1 [shape = 'u32[144,128]{1,0:T(1,128)}', space=vmem, size = 0x12000, scoped, tag = 'internal scratch']
  %s0 = inlined_call_operand.vmem [shape: f32[8,32], index: 0, kind: input, shape index: {}]
  %s1 = inlined_call_operand.vmem [shape: f32[32,128], index: 1, kind: input, shape index: {}]
  %s2 = inlined_call_operand.vmem [shape: f32[1,128], index: 2, kind: input, shape index: {}]
  %s3 = inlined_call_operand.vmem [shape: f32[128,128], index: 3, kind: input, shape index: {}]
  %s4 = inlined_call_operand.vmem [shape: f32[1,128], index: 4, kind: input, shape index: {}]
  %s5 = inlined_call_operand.hbm [shape: f32[8,128], index: 5, kind: output, shape index: {0}]
  %s6 = inlined_call_operand.hbm [shape: f32[8,128], index: 6, kind: output, shape index: {1}]
  %7 = xla_tuple %s5, %s6
  %s8 = sld [smem:[#allocation0]]
  $region38: #{pcbm_forward.1} parent=0
    _
  %s10 = ssub.s32 1, %s8
  %s11 = scalar_select 0, %s10, %s8
  $region1: #{pcbm_forward.1} parent=0
    #allocation2 [shape = 'u8[4096]{0}', space=vmem, size = 0x1000, scoped, tag = 'output window, operand 0, single buffered']
    #allocation3 [shape = 's32[1]{0}', space=sflag, size = 0x4, scoped, tag = 'scoped memory for pcbm_forward.1']
    #allocation4 [shape = 'u8[4096]{0}', space=vmem, size = 0x1000, scoped, tag = 'output window, operand 1, single buffered']
    #allocation5 [shape = 's32[1]{0}', space=sflag, size = 0x4, scoped, tag = 'scoped memory for pcbm_forward.1']
    %12 = vsyncpa [#allocation3], 0
    %13 = vsyncpa [#allocation5], 0
    // Predicated region
    $region2: #{pcbm_forward.1} parent=1 // pred_check
      _
    $region3: #{pcbm_forward.1} parent=1 // pred_check_branch
      %15 = sbr.rel (0) target = $region5
    $region4: #{pcbm_forward.1} parent=1 // pred_region
      _
    $region5: #{pcbm_forward.1} parent=1 // pred_fallthru
      _
    // Predicated region
    $region6: #{pcbm_forward.1} parent=1 // pred_check
      _
    $region7: #{pcbm_forward.1} parent=1 // pred_check_branch
      %17 = sbr.rel (0) target = $region9
    $region8: #{pcbm_forward.1} parent=1 // pred_region
      _
    $region9: #{pcbm_forward.1} parent=1 // pred_fallthru
      _
    // Predicated region
    $region10: #{pcbm_forward.1} parent=1 // pred_check
      _
    $region11: #{pcbm_forward.1} parent=1 // pred_check_branch
      %19 = sbr.rel (0) target = $region13
    $region12: #{pcbm_forward.1} parent=1 // pred_region
      _
    $region13: #{pcbm_forward.1} parent=1 // pred_fallthru
      _
    // Predicated region
    $region14: #{pcbm_forward.1} parent=1 // pred_check
      _
    $region15: #{pcbm_forward.1} parent=1 // pred_check_branch
      %21 = sbr.rel (0) target = $region17
    $region16: #{pcbm_forward.1} parent=1 // pred_region
      _
    $region17: #{pcbm_forward.1} parent=1 // pred_fallthru
      _
    // Predicated region
    $region18: #{pcbm_forward.1} parent=1 // pred_check
      _
    $region19: #{pcbm_forward.1} parent=1 // pred_check_branch
      %23 = sbr.rel (0) target = $region21
    $region20: #{pcbm_forward.1} parent=1 // pred_region
      _
    $region21: #{pcbm_forward.1} parent=1 // pred_fallthru
      _
    %v24 = vld [vmem:[%s0] sm:$0xff]
    %v25 = vld [vmem:[%s1] sm:$0xff]
    %v26 = vld [vmem:[%s1 + $0x8] sm:$0xff]
    %v27 = vld [vmem:[%s1 + $0x10] sm:$0xff]
    %v28 = vld [vmem:[%s1 + $0x18] sm:$0xff]
    %v29 = vld [vmem:[%s2] sm:$0x1]
    %v31 = vlaneseq
    %v32 = vshrl.u32 %v31, 7
    %v33 = vsub.s32 0, %v32
    %v34 = vrot.slane %v29, %v33
    %vm36 = vcmask 261120
    %v38 = vsel %vm36, %v24, 0
    %40 = vmatprep.subr.mxu0 0.0
    %41 = vmatpush1.msra.mxu0 %v25
    %42 = vmatprep.subr.mxu0 0.0
    %43 = vmatpush1.msra.mxu0 %v26
    %44 = vmatprep.subr.mxu0 0.0
    %45 = vmatpush1.msra.mxu0 %v27
    %46 = vmatprep.subr.mxu0 0.0
    %47 = vmatpush1.msra.mxu0 %v28
    %48 = vmatprep.subr.mxu0 0.0
    %49 = vmatpush1.msra.mxu0 0.0
    %50 = vmatprep.subr.mxu0 0.0
    %51 = vmatpush1.msra.mxu0 0.0
    %52 = vmatprep.subr.mxu0 0.0
    %53 = vmatpush1.msra.mxu0 0.0
    %54 = vmatprep.subr.mxu0 0.0
    %55 = vmatpush1.msra.mxu0 0.0
    %56 = vmatprep.subr.mxu0 0.0
    %57 = vmatpush1.msra.mxu0 0.0
    %58 = vmatprep.subr.mxu0 0.0
    %59 = vmatpush1.msra.mxu0 0.0
    %60 = vmatprep.subr.mxu0 0.0
    %61 = vmatpush1.msra.mxu0 0.0
    %62 = vmatprep.subr.mxu0 0.0
    %63 = vmatpush1.msra.mxu0 0.0
    %64 = vmatprep.subr.mxu0 0.0
    %65 = vmatpush1.msra.mxu0 0.0
    %66 = vmatprep.subr.mxu0 0.0
    %67 = vmatpush1.msra.mxu0 0.0
    %68 = vmatprep.subr.mxu0 0.0
    %69 = vmatpush1.msra.mxu0 0.0
    %70 = vmatprep.subr.mxu0 0.0
    %71 = vmatpush1.msra.mxu0 0.0
    %72 = vmatprep.subr.mxu0 0.0
    %73 = vmatpush1.msra.mxu0 0.0
    %74 = vmatprep.subr.mxu0 0.0
    %75 = vmatpush1.msra.mxu0 0.0
    %76 = vmatprep.subr.mxu0 0.0
    %77 = vmatpush1.msra.mxu0 0.0
    %78 = vmatprep.subr.mxu0 0.0
    %79 = vmatpush1.msra.mxu0 0.0
    %80 = vmatprep.subr.mxu0 0.0
    %81 = vmatpush1.msra.mxu0 0.0
    %82 = vmatprep.subr.mxu0 0.0
    %83 = vmatpush1.msra.mxu0 0.0
    %84 = vmatprep.subr.mxu0 0.0
    %85 = vmatpush1.msra.mxu0 0.0
    %86 = vmatprep.subr.mxu0 0.0
    %87 = vmatpush1.msra.mxu0 0.0
    %88 = vmatprep.subr.mxu0 0.0
    %89 = vmatpush1.msra.mxu0 0.0
    %90 = vmatprep.subr.mxu0 0.0
    %91 = vmatpush1.msra.mxu0 0.0
    %92 = vmatprep.subr.mxu0 0.0
    %93 = vmatpush1.msra.mxu0 0.0
    %94 = vmatprep.subr.mxu0 0.0
    %95 = vmatpush1.msra.mxu0 0.0
    %96 = vmatprep.subr.mxu0 0.0
    %97 = vmatpush1.msra.mxu0 0.0
    %98 = vmatprep.subr.mxu0 0.0
    %99 = vmatpush1.msra.mxu0 0.0
    %100 = vmatprep.subr.mxu0 0.0
    %101 = vmatpush1.msra.mxu0 0.0
    %102 = vmatprep.subr.mxu0 0.0
    %103 = vmatpush1.msra.mxu0 0.0
    %104 = vmatprep.mubr.f32.mxu0 0.0
    %105 = vmatmul.mubr.f32.gmra.mrb[0].mxu0 %v38
    %v106 = vpop.f32.mrb[0].mxu0
    %v107 = vadd.f32 %v34, %v106
    %v108 = vpop.f32.mrb[0].mxu0
    %109 = vdwg.mxu0
    %110 = vst [vmem:[#allocation4] sm:$0xff] %v107
    %v111 = vld [vmem:[%s3] sm:$0xff]
    %v112 = vld [vmem:[%s3 + $0x8] sm:$0xff]
    %v113 = vld [vmem:[%s3 + $0x10] sm:$0xff]
    %v114 = vld [vmem:[%s3 + $0x18] sm:$0xff]
    %v115 = vld [vmem:[%s3 + $0x20] sm:$0xff]
    %v116 = vld [vmem:[%s3 + $0x28] sm:$0xff]
    %v117 = vld [vmem:[%s3 + $0x30] sm:$0xff]
    %v118 = vld [vmem:[%s3 + $0x38] sm:$0xff]
    %v119 = vld [vmem:[%s3 + $0x40] sm:$0xff]
    %v120 = vld [vmem:[%s3 + $0x48] sm:$0xff]
    %v121 = vld [vmem:[%s3 + $0x50] sm:$0xff]
    %v122 = vld [vmem:[%s3 + $0x58] sm:$0xff]
    %v123 = vld [vmem:[%s3 + $0x60] sm:$0xff]
    %v124 = vld [vmem:[%s3 + $0x68] sm:$0xff]
    %v125 = vld [vmem:[%s3 + $0x70] sm:$0xff]
    %v126 = vld [vmem:[%s3 + $0x78] sm:$0xff]
    %v127 = vld [vmem:[%s4] sm:$0x1]
    %v129 = vlaneseq
    %v130 = vshrl.u32 %v129, 7
    %v131 = vsub.s32 0, %v130
    %v132 = vrot.slane %v127, %v131
    %134 = vmatprep.subr.mxu0 0.0
    %135 = vmatpush1.msra.mxu0 %v111
    %136 = vmatprep.subr.mxu0 0.0
    %137 = vmatpush1.msra.mxu0 %v112
    %138 = vmatprep.subr.mxu0 0.0
    %139 = vmatpush1.msra.mxu0 %v113
    %140 = vmatprep.subr.mxu0 0.0
    %141 = vmatpush1.msra.mxu0 %v114
    %142 = vmatprep.subr.mxu0 0.0
    %143 = vmatpush1.msra.mxu0 %v115
    %144 = vmatprep.subr.mxu0 0.0
    %145 = vmatpush1.msra.mxu0 %v116
    %146 = vmatprep.subr.mxu0 0.0
    %147 = vmatpush1.msra.mxu0 %v117
    %148 = vmatprep.subr.mxu0 0.0
    %149 = vmatpush1.msra.mxu0 %v118
    %150 = vmatprep.subr.mxu0 0.0
    %151 = vmatpush1.msra.mxu0 %v119
    %152 = vmatprep.subr.mxu0 0.0
    %153 = vmatpush1.msra.mxu0 %v120
    %154 = vmatprep.subr.mxu0 0.0
    %155 = vmatpush1.msra.mxu0 %v121
    %156 = vmatprep.subr.mxu0 0.0
    %157 = vmatpush1.msra.mxu0 %v122
    %158 = vmatprep.subr.mxu0 0.0
    %159 = vmatpush1.msra.mxu0 %v123
    %160 = vmatprep.subr.mxu0 0.0
    %161 = vmatpush1.msra.mxu0 %v124
    %162 = vmatprep.subr.mxu0 0.0
    %163 = vmatpush1.msra.mxu0 %v125
    %164 = vmatprep.subr.mxu0 0.0
    %165 = vmatpush1.msra.mxu0 %v126
    %166 = vmatprep.subr.mxu0 0.0
    %167 = vmatpush1.msra.mxu0 0.0
    %168 = vmatprep.subr.mxu0 0.0
    %169 = vmatpush1.msra.mxu0 0.0
    %170 = vmatprep.subr.mxu0 0.0
    %171 = vmatpush1.msra.mxu0 0.0
    %172 = vmatprep.subr.mxu0 0.0
    %173 = vmatpush1.msra.mxu0 0.0
    %174 = vmatprep.subr.mxu0 0.0
    %175 = vmatpush1.msra.mxu0 0.0
    %176 = vmatprep.subr.mxu0 0.0
    %177 = vmatpush1.msra.mxu0 0.0
    %178 = vmatprep.subr.mxu0 0.0
    %179 = vmatpush1.msra.mxu0 0.0
    %180 = vmatprep.subr.mxu0 0.0
    %181 = vmatpush1.msra.mxu0 0.0
    %182 = vmatprep.subr.mxu0 0.0
    %183 = vmatpush1.msra.mxu0 0.0
    %184 = vmatprep.subr.mxu0 0.0
    %185 = vmatpush1.msra.mxu0 0.0
    %186 = vmatprep.subr.mxu0 0.0
    %187 = vmatpush1.msra.mxu0 0.0
    %188 = vmatprep.subr.mxu0 0.0
    %189 = vmatpush1.msra.mxu0 0.0
    %190 = vmatprep.subr.mxu0 0.0
    %191 = vmatpush1.msra.mxu0 0.0
    %192 = vmatprep.subr.mxu0 0.0
    %193 = vmatpush1.msra.mxu0 0.0
    %194 = vmatprep.subr.mxu0 0.0
    %195 = vmatpush1.msra.mxu0 0.0
    %196 = vmatprep.subr.mxu0 0.0
    %197 = vmatpush1.msra.mxu0 0.0
    %198 = vmatprep.mubr.f32.mxu0 0.0
    %199 = vmatmul.mubr.f32.gmra.mrb[0].mxu0 %v107
    %v200 = vpop.f32.mrb[0].mxu0
    %v201 = vadd.f32 %v132, %v200
    %v202 = vpop.f32.mrb[0].mxu0
    %203 = vdwg.mxu0
    %204 = vst [vmem:[#allocation2] sm:$0xff] %v201
    // Predicated region
    $region22: #{pcbm_forward.1} parent=1 // pred_check
      _
    $region23: #{pcbm_forward.1} parent=1 // pred_check_branch
      %206 = sbr.rel (0) target = $region25
    $region24: #{pcbm_forward.1} parent=1 // pred_region
      %s208 = ssub.s32 128, 128
      %209 = vsyncadd [#allocation3], %s208
      %s211 = sshll.u32 [#allocation2], 4
      %s212 = int_to_ptr.vmem [resolvable:$true] %s211
      %214 = dma.vmem_to_hbm [thread:$0]  %s212, 128, %s5, [#allocation3]
    $region25: #{pcbm_forward.1} parent=1 // pred_fallthru
      _
    // Predicated region
    $region26: #{pcbm_forward.1} parent=1 // pred_check
      _
    $region27: #{pcbm_forward.1} parent=1 // pred_check_branch
      %216 = sbr.rel (0) target = $region29
    $region28: #{pcbm_forward.1} parent=1 // pred_region
      %s218 = ssub.s32 128, 128
      %219 = vsyncadd [#allocation5], %s218
      %s221 = sshll.u32 [#allocation4], 4
      %s222 = int_to_ptr.vmem [resolvable:$true] %s221
      %224 = dma.vmem_to_hbm [thread:$0]  %s222, 128, %s6, [#allocation5]
    $region29: #{pcbm_forward.1} parent=1 // pred_fallthru
      _
    // Predicated region
    $region30: #{pcbm_forward.1} parent=1 // pred_check
      _
    $region31: #{pcbm_forward.1} parent=1 // pred_check_branch
      %226 = sbr.rel (0) target = $region33
    $region32: #{pcbm_forward.1} parent=1 // pred_region
      %227 = dma.done [#allocation3], 128
    $region33: #{pcbm_forward.1} parent=1 // pred_fallthru
      _
    // Predicated region
    $region34: #{pcbm_forward.1} parent=1 // pred_check
      _
    $region35: #{pcbm_forward.1} parent=1 // pred_check_branch
      %229 = sbr.rel (0) target = $region37
    $region36: #{pcbm_forward.1} parent=1 // pred_region
      %230 = dma.done [#allocation5], 128
    $region37: #{pcbm_forward.1} parent=1 // pred_fallthru
      _
    %231 = vsyncpa [#allocation3], 1
    %232 = vsyncpa [#allocation5], 1

</llo_original>
